<compile_context>
chip_gen: v7x
topology: tpu7x:2x2x1
jax: 0.10.0
libtpu: 0.0.40
codegen_flags: <defaults>
</compile_context>

<pallas_src>
import jax
import jax.numpy as jnp
from jax.experimental import pallas as pl
from jax.experimental.pallas import tpu as pltpu


def _contour_kernel(pred_ref, contour_ref, mask_ref, out_ref):
    # pred_ref / mask_ref : (1, 2, TH, W)   contour_ref : (1, 1, TH, W)
    # out_ref             : (1, TH, W)  (resident accumulator across the j axis)
    j = pl.program_id(1)

    @pl.when(j == 0)
    def _init():
        out_ref[...] = jnp.zeros_like(out_ref)

    x = pred_ref[...].astype(jnp.float32)                       # (1, 2, TH, W)
    m = mask_ref[...].astype(jnp.float32) * 0.999 + 0.0005      # (1, 2, TH, W)
    c0 = contour_ref[...].astype(jnp.float32)[:, 0, :, :]       # (1, TH, W)

    # log(sigmoid(x/2)) / log(1 - sigmoid(x/2)) via one stable softplus.
    z = -0.5 * x
    sp = jnp.maximum(z, 0.0) + jnp.log1p(jnp.exp(-jnp.abs(z)))  # softplus(-x/2)
    logp = -sp                                                  # log(sigmoid(x/2))
    log1mp = z - sp                                             # log(1 - sigmoid(x/2))

    bce = m * logp + (1.0 - m) * log1mp                         # (1, 2, TH, W)
    # loss1 + loss2 == sum_c bce_c + belta * contour0 * logp0   (belta == 1)
    partial = -(jnp.sum(bce, axis=1) + c0 * logp[:, 0, :, :])   # (1, TH, W), VPU adds only
    out_ref[...] += partial


def _nocontour_kernel(pred_ref, mask_ref, out_ref):
    # pred_ref / mask_ref : (1, C, TH, W)   out_ref : (1, TH, W)
    j = pl.program_id(1)

    @pl.when(j == 0)
    def _init():
        out_ref[...] = jnp.zeros_like(out_ref)

    x = pred_ref[...].astype(jnp.float32)
    m = mask_ref[...].astype(jnp.float32) * 0.999 + 0.0005

    z = -0.5 * x
    sp = jnp.maximum(z, 0.0) + jnp.log1p(jnp.exp(-jnp.abs(z)))
    logp = -sp
    log1mp = z - sp

    bce = m * logp + (1.0 - m) * log1mp
    out_ref[...] += -jnp.sum(bce, axis=1)                       # (1, TH, W)


def _pick_tile_h(H, C, W, itemsize=4, per_input_budget_bytes=1 << 20):
    """Largest multiple-of-8 divisor of H whose (C, TH, W) tile fits the budget."""
    if H % 8 != 0:
        return H  # must use the full dim to satisfy the (8, 128) block rule
    best = 8
    th = 8
    while th <= H:
        if H % th == 0 and C * th * W * itemsize <= per_input_budget_bytes:
            best = th
        th += 8
    return best


def modify_loss(mask_pred, mask_contour, mask, *, tile_h=None):
    """Pallas implementation of ModifyLoss.forward (returns a float32 scalar)."""
    B, C, H, W = mask_pred.shape

    if tile_h is None:
        tile_h = _pick_tile_h(H, C, W, itemsize=jnp.dtype(mask_pred.dtype).itemsize)
    assert H % tile_h == 0, "tile_h must divide H"
    n_row_tiles = H // tile_h

    compiler_params = pltpu.CompilerParams(
        dimension_semantics=("parallel", "arbitrary"),
        vmem_limit_bytes=32 * 1024 * 1024,
    )
    out_shape = jax.ShapeDtypeStruct((B, tile_h, W), jnp.float32)
    out_spec = pl.BlockSpec((1, tile_h, W), lambda b, j: (b, 0, 0))
    full_spec = pl.BlockSpec((1, C, tile_h, W), lambda b, j: (b, 0, j, 0))

    if mask_contour is None:
        partials = pl.pallas_call(
            _nocontour_kernel,
            out_shape=out_shape,
            grid=(B, n_row_tiles),
            in_specs=[full_spec, full_spec],
            out_specs=out_spec,
            compiler_params=compiler_params,
        )(mask_pred, mask)
        # torch.mean over (B, C, H, W)
        return jnp.sum(partials) / jnp.float32(B * C * H * W)

    assert C == 2, "contour path of ModifyLoss uses exactly channels 0 and 1"
    contour_spec = pl.BlockSpec((1, 1, tile_h, W), lambda b, j: (b, 0, j, 0))
    partials = pl.pallas_call(
        _contour_kernel,
        out_shape=out_shape,
        grid=(B, n_row_tiles),
        in_specs=[full_spec, contour_spec, full_spec],
        out_specs=out_spec,
        compiler_params=compiler_params,
    )(mask_pred, mask_contour, mask)
    # torch.mean over (B, H, W) of loss1 + loss2
    return jnp.sum(partials) / jnp.float32(B * H * W)


def _reference(mask_pred, mask_contour, mask):
    """Pure-JAX reference mirroring the PyTorch forward, for verification."""
    belta = 1.0
    p = 1.0 / (1.0 + jnp.exp(-mask_pred / 2.0))
    m = mask * 0.999 + 0.0005
    if mask_contour is None:
        loss = m * jnp.log(p + 1e-10) + (1 - m) * jnp.log(1 - p + 1e-10)
        return jnp.mean(-loss)
    loss1 = (m[:, 0] + belta * mask_contour[:, 0]) * jnp.log(p[:, 0] + 1e-10) \
            + (1 - m[:, 0]) * jnp.log(1 - p[:, 0] + 1e-10)
    loss2 = m[:, 1] * jnp.log(p[:, 1] + 1e-10) \
            + (1 - m[:, 1]) * jnp.log(1 - p[:, 1] + 1e-10)
    return jnp.mean(-(loss1 + loss2))


if __name__ == "__main__":
    key = jax.random.PRNGKey(0)
    k1, k2, k3 = jax.random.split(key, 3)

    B, C, H, W = 2, 2, 32, 128  # ModifyLoss indexes channels 0 and 1 => C = 2
    mask_pred = jax.random.normal(k1, (B, C, H, W), dtype=jnp.float32) * 3.0
    mask = (jax.random.uniform(k2, (B, C, H, W)) > 0.5).astype(jnp.float32)
    mask_contour = (jax.random.uniform(k3, (B, C, H, W)) > 0.8).astype(jnp.float32)

    # contour path, explicit small tile so the multi-tile accumulation is exercised
    out = jax.block_until_ready(modify_loss(mask_pred, mask_contour, mask, tile_h=8))
    ref = _reference(mask_pred, mask_contour, mask)
    assert jnp.allclose(out, ref, rtol=1e-5, atol=1e-5), (out, ref)

    # contour path, automatic tile selection
    out_auto = jax.block_until_ready(modify_loss(mask_pred, mask_contour, mask))
    assert jnp.allclose(out_auto, ref, rtol=1e-5, atol=1e-5), (out_auto, ref)

    # mask_contour is None path
    out_nc = jax.block_until_ready(modify_loss(mask_pred, None, mask, tile_h=8))
    ref_nc = _reference(mask_pred, None, mask)
    assert jnp.allclose(out_nc, ref_nc, rtol=1e-5, atol=1e-5), (out_nc, ref_nc)

    # bf16-streamed masks/contour (0/1 values are exact in bf16); math stays f32 in-kernel
    out_bf16 = jax.block_until_ready(
        modify_loss(mask_pred, mask_contour.astype(jnp.bfloat16),
                    mask.astype(jnp.bfloat16), tile_h=8))
    assert jnp.allclose(out_bf16, ref, rtol=1e-5, atol=1e-5), (out_bf16, ref)

    print("KERNEL_OK")
</pallas_src>

<mosaic_0001>
module attributes {stable_mosaic.version = 11 : i64} {
  func.func @_contour_kernel(%arg0: i32, %arg1: i32, %arg2: memref<1x2x8x128xf32, #tpu.memory_space<vmem>>, %arg3: memref<1x1x8x128xf32, #tpu.memory_space<vmem>>, %arg4: memref<1x2x8x128xf32, #tpu.memory_space<vmem>>, %arg5: memref<1x8x128xf32, #tpu.memory_space<vmem>>) attributes {dimension_semantics = [#tpu.dimension_semantics<parallel>, #tpu.dimension_semantics<arbitrary>], iteration_bounds = array<i64: 2, 4>, scalar_prefetch = 0 : i64, scratch_operands = 0 : i64, tpu.core_type = #tpu.core_type<tc>, window_params = [{transform_indices = @transform_0, window_bounds = array<i64: 1, 2, 8, 128>}, {transform_indices = @transform_1, window_bounds = array<i64: 1, 1, 8, 128>}, {transform_indices = @transform_2, window_bounds = array<i64: 1, 2, 8, 128>}, {transform_indices = @transform_3, window_bounds = array<i64: 1, 8, 128>}]} {
    %c0_i32 = arith.constant 0 : i32
    %0 = arith.cmpi eq, %arg1, %c0_i32 : i32
    %1 = arith.extui %0 : i1 to i32
    %c0_i32_0 = arith.constant 0 : i32
    %2 = arith.cmpi ne, %1, %c0_i32_0 : i32
    scf.if %2 {
      %cst_26 = arith.constant 0.000000e+00 : f32
      %39 = vector.broadcast %cst_26 : f32 to vector<1x8x128xf32>
      %c0_27 = arith.constant 0 : index
      %c0_28 = arith.constant 0 : index
      %c0_29 = arith.constant 0 : index
      %40 = vector.load %arg5[%c0_27, %c0_28, %c0_29] : memref<1x8x128xf32, #tpu.memory_space<vmem>>, vector<1x8x128xf32>
      tpu.vector_store %arg5[%c0_27, %c0_28, %c0_29], %39 {strides = array<i32>} : memref<1x8x128xf32, #tpu.memory_space<vmem>>, vector<1x8x128xf32>,
    } else {
    }
    %c0 = arith.constant 0 : index
    %c0_1 = arith.constant 0 : index
    %c0_2 = arith.constant 0 : index
    %c0_3 = arith.constant 0 : index
    %3 = vector.load %arg2[%c0, %c0_1, %c0_2, %c0_3] : memref<1x2x8x128xf32, #tpu.memory_space<vmem>>, vector<1x2x8x128xf32>
    %c0_4 = arith.constant 0 : index
    %c0_5 = arith.constant 0 : index
    %c0_6 = arith.constant 0 : index
    %c0_7 = arith.constant 0 : index
    %4 = vector.load %arg4[%c0_4, %c0_5, %c0_6, %c0_7] : memref<1x2x8x128xf32, #tpu.memory_space<vmem>>, vector<1x2x8x128xf32>
    %cst = arith.constant 9.990000e-01 : f32
    %5 = vector.broadcast %cst : f32 to vector<1x2x8x128xf32>
    %6 = arith.mulf %4, %5 : vector<1x2x8x128xf32>
    %cst_8 = arith.constant 5.000000e-04 : f32
    %7 = vector.broadcast %cst_8 : f32 to vector<1x2x8x128xf32>
    %8 = arith.addf %6, %7 : vector<1x2x8x128xf32>
    %c0_9 = arith.constant 0 : index
    %c0_10 = arith.constant 0 : index
    %c0_11 = arith.constant 0 : index
    %c0_12 = arith.constant 0 : index
    %9 = vector.load %arg3[%c0_9, %c0_10, %c0_11, %c0_12] : memref<1x1x8x128xf32, #tpu.memory_space<vmem>>, vector<1x1x8x128xf32>
    %10 = vector.shape_cast %9 : vector<1x1x8x128xf32> to vector<1x8x128xf32>
    %cst_13 = arith.constant -5.000000e-01 : f32
    %11 = vector.broadcast %cst_13 : f32 to vector<1x2x8x128xf32>
    %12 = arith.mulf %11, %3 : vector<1x2x8x128xf32>
    %cst_14 = arith.constant 0.000000e+00 : f32
    %13 = vector.broadcast %cst_14 : f32 to vector<1x2x8x128xf32>
    %14 = arith.maximumf %12, %13 : vector<1x2x8x128xf32>
    %15 = math.absf %12 : vector<1x2x8x128xf32>
    %cst_15 = arith.constant 0.000000e+00 : f32
    %16 = vector.broadcast %cst_15 : f32 to vector<1x2x8x128xf32>
    %17 = arith.subf %16, %15 : vector<1x2x8x128xf32>
    %18 = math.exp %17 : vector<1x2x8x128xf32>
    %19 = math.log1p %18 : vector<1x2x8x128xf32>
    %20 = arith.addf %14, %19 : vector<1x2x8x128xf32>
    %cst_16 = arith.constant 0.000000e+00 : f32
    %21 = vector.broadcast %cst_16 : f32 to vector<1x2x8x128xf32>
    %22 = arith.subf %21, %20 : vector<1x2x8x128xf32>
    %23 = arith.subf %12, %20 : vector<1x2x8x128xf32>
    %24 = arith.mulf %8, %22 : vector<1x2x8x128xf32>
    %cst_17 = arith.constant 1.000000e+00 : f32
    %25 = vector.broadcast %cst_17 : f32 to vector<1x2x8x128xf32>
    %26 = arith.subf %25, %8 : vector<1x2x8x128xf32>
    %27 = arith.mulf %26, %23 : vector<1x2x8x128xf32>
    %28 = arith.addf %24, %27 : vector<1x2x8x128xf32>
    %cst_18 = arith.constant dense<0.000000e+00> : vector<1x8x128xf32>
    %29 = vector.multi_reduction <add>, %28, %cst_18 [1] : vector<1x2x8x128xf32> to vector<1x8x128xf32>
    %30 = vector.extract_strided_slice %22 {offsets = [0, 0, 0, 0], sizes = [1, 1, 8, 128], strides = [1, 1, 1, 1]} : vector<1x2x8x128xf32> to vector<1x1x8x128xf32>
    %31 = vector.shape_cast %30 : vector<1x1x8x128xf32> to vector<1x8x128xf32>
    %32 = arith.mulf %10, %31 : vector<1x8x128xf32>
    %33 = arith.addf %29, %32 : vector<1x8x128xf32>
    %cst_19 = arith.constant 0.000000e+00 : f32
    %34 = vector.broadcast %cst_19 : f32 to vector<1x8x128xf32>
    %35 = arith.subf %34, %33 : vector<1x8x128xf32>
    %c0_20 = arith.constant 0 : index
    %c0_21 = arith.constant 0 : index
    %c0_22 = arith.constant 0 : index
    %36 = vector.load %arg5[%c0_20, %c0_21, %c0_22] : memref<1x8x128xf32, #tpu.memory_space<vmem>>, vector<1x8x128xf32>
    %37 = arith.addf %36, %35 : vector<1x8x128xf32>
    %c0_23 = arith.constant 0 : index
    %c0_24 = arith.constant 0 : index
    %c0_25 = arith.constant 0 : index
    %38 = vector.load %arg5[%c0_23, %c0_24, %c0_25] : memref<1x8x128xf32, #tpu.memory_space<vmem>>, vector<1x8x128xf32>
    tpu.vector_store %arg5[%c0_23, %c0_24, %c0_25], %37 {strides = array<i32>} : memref<1x8x128xf32, #tpu.memory_space<vmem>>, vector<1x8x128xf32>,
    return
  }
  func.func @transform_0(%arg0: i32, %arg1: i32) -> (i32, i32, i32, i32) {
    %c0_i32 = arith.constant 0 : i32
    %c0_i32_0 = arith.constant 0 : i32
    %c0_i32_1 = arith.constant 0 : i32
    return %arg0, %c0_i32, %arg1, %c0_i32_0 : i32, i32, i32, i32
  }
  func.func @transform_1(%arg0: i32, %arg1: i32) -> (i32, i32, i32, i32) {
    %c0_i32 = arith.constant 0 : i32
    %c0_i32_0 = arith.constant 0 : i32
    %c0_i32_1 = arith.constant 0 : i32
    return %arg0, %c0_i32, %arg1, %c0_i32_0 : i32, i32, i32, i32
  }
  func.func @transform_2(%arg0: i32, %arg1: i32) -> (i32, i32, i32, i32) {
    %c0_i32 = arith.constant 0 : i32
    %c0_i32_0 = arith.constant 0 : i32
    %c0_i32_1 = arith.constant 0 : i32
    return %arg0, %c0_i32, %arg1, %c0_i32_0 : i32, i32, i32, i32
  }
  func.func @transform_3(%arg0: i32, %arg1: i32) -> (i32, i32, i32) {
    %c0_i32 = arith.constant 0 : i32
    %c0_i32_0 = arith.constant 0 : i32
    %c0_i32_1 = arith.constant 0 : i32
    return %arg0, %c0_i32, %c0_i32_0 : i32, i32, i32
  }
}

</mosaic_0001>

<llo_original>
// kernel: tpu_custom_call.1
$region0: #{tpu_custom_call.1}
  #allocation0 [shape = 'u32[]', space=smem, size = 0x4, offset = 0x4, fixed_abs, tag = 'smem constant byte address 0x4 - core index']
  #allocation1 [shape = 'u32[144,128]{1,0:T(1,128)}', space=vmem, size = 0x12000, scoped, tag = 'internal scratch']
  %s0 = inlined_call_operand.hbm [shape: f32[2,2,32,128], index: 0, kind: input, shape index: {}]
  %s1 = inlined_call_operand.hbm [shape: f32[2,2,32,128], index: 1, kind: input, shape index: {}]
  %s2 = inlined_call_operand.hbm [shape: f32[2,2,32,128], index: 2, kind: input, shape index: {}]
  %s3 = inlined_call_operand.hbm [shape: f32[2,8,128], index: 3, kind: output, shape index: {}]
  %s4 = sld [smem:[#allocation0]]
  $region61: #{tpu_custom_call.1} parent=0
    _
  %s6 = ssub.s32 1, %s4
  %s7 = scalar_select 0, %s6, %s4
  $region1: #{tpu_custom_call.1} parent=0
    #allocation2 [shape = 'u8[16384]{0}', space=vmem, size = 0x4000, scoped, tag = 'input window, operand 0']
    #allocation3 [shape = 's32[2]{0}', space=sflag, size = 0x8, scoped, tag = 'scoped memory for tpu_custom_call.1']
    #allocation4 [shape = 's32[2]{0}', space=sflag, size = 0x8, scoped, tag = 'scoped memory for tpu_custom_call.1']
    #allocation5 [shape = 'u8[8192]{0}', space=vmem, size = 0x2000, scoped, tag = 'input window, operand 1']
    #allocation6 [shape = 's32[2]{0}', space=sflag, size = 0x8, scoped, tag = 'scoped memory for tpu_custom_call.1']
    #allocation7 [shape = 'u8[16384]{0}', space=vmem, size = 0x4000, scoped, tag = 'input window, operand 2']
    #allocation8 [shape = 'u8[8192]{0}', space=vmem, size = 0x2000, scoped, tag = 'output window, operand 0']
    %8 = vsyncpa [#allocation3], 0
    %s9 = scalar_lea.sflag [#allocation3], 1
    %10 = vsyncpa %s9, 0
    %11 = vsyncpa [#allocation6], 0
    %s12 = scalar_lea.sflag [#allocation6], 1
    %13 = vsyncpa %s12, 0
    %14 = vsyncpa [#allocation4], 0
    %s15 = scalar_lea.sflag [#allocation4], 1
    %16 = vsyncpa %s15, 0
    loop: start=0, step=1, limit=10
    $region2: #{tpu_custom_call.1} parent=1 // loop_pre_header
      _
    $region3: #{tpu_custom_call.1} parent=1 // loop_header
      %s18 = sphi 0, %s22
      %p19 = scmp.ge.s32.totalorder %s18, 10
      %s25 = sphi 0, %s37
      %s26 = sphi 0, %s33
      %s27 = sphi 0, %s25
      %s28 = sphi 0, %s26
      %s29 = sphi 0, %s27
      %s30 = sphi 0, %s28
      %s42 = sphi 0, %s44
      %s45 = sphi 0, %s42
      %s46 = sphi 0, %s45
      %s62 = sphi 0, %s46
      %s70 = sphi 0, %s72
      %s73 = sphi 0, %s70
      %s74 = sphi 0, %s73
      %s90 = sphi 0, %s74
      %s98 = sphi 0, %s100
      %s101 = sphi 0, %s98
      %s102 = sphi 0, %s101
      %s118 = sphi 0, %s102
      %s124 = sphi 0, %s126
      %s127 = sphi 0, %s124
      %s128 = sphi 0, %s127
      %s144 = sphi 0, %s128
    $region4: #{tpu_custom_call.1} parent=1 // loop_header_branch
      %21 = sbr.rel (%p19) target = $region8
    $region5: #{tpu_custom_call.1} parent=1 // loop_body
      %s23 = ssub.s32 %s18, 1
      %s24 = ssub.s32 %s18, 2
      %s31 = sadd.s32 1, %s26
      %p32 = scmp.ge.s32.totalorder %s31, 4
      %s33 = scalar_select %p32, 0, %s31
      %s34 = sadd.s32 1, %s25
      %s35 = scalar_select %p32, %s34, %s25
      %p36 = scmp.ge.s32.totalorder %s35, 2
      %s37 = scalar_select %p36, 0, %s35
      %s38 = ssub.s32 %s25, %s37
      %s39 = ssub.s32 %s26, %s33
      %s40 = sor.u32 %s38, %s39
      %p41 = scmp.eq.s32.totalorder %s40, 0
      %s43 = sadd.s32 %s42, 1
      %s44 = scalar_select %p41, %s42, %s43
      %p47 = pneg %p41
      %p48 = scmp.eq.s32.totalorder %s18, 7
      %p49 = por %p47, %p48
      %p50 = scmp.ne.s32.totalorder %s42, %s45
      %p51 = scmp.eq.s32.totalorder %s18, 0
      %p52 = por %p50, %p51
      %p53 = scmp.ne.s32.totalorder %s42, %s45
      %p54 = scmp.eq.s32.totalorder %s23, 7
      %p55 = por %p53, %p54
      %p56 = scmp.ne.s32.totalorder %s45, %s46
      %p57 = scmp.eq.s32.totalorder %s23, 0
      %p58 = por %p56, %p57
      %p59 = scmp.ne.s32.totalorder %s45, %s46
      %p60 = scmp.eq.s32.totalorder %s24, 7
      %p61 = por %p59, %p60
      %p63 = scmp.ne.s32.totalorder %s46, %s62
      %p64 = scmp.eq.s32.totalorder %s24, 0
      %p65 = por %p63, %p64
      %s66 = ssub.s32 %s25, %s37
      %s67 = ssub.s32 %s26, %s33
      %s68 = sor.u32 %s66, %s67
      %p69 = scmp.eq.s32.totalorder %s68, 0
      %s71 = sadd.s32 %s70, 1
      %s72 = scalar_select %p69, %s70, %s71
      %p75 = pneg %p69
      %p76 = scmp.eq.s32.totalorder %s18, 7
      %p77 = por %p75, %p76
      %p78 = scmp.ne.s32.totalorder %s70, %s73
      %p79 = scmp.eq.s32.totalorder %s18, 0
      %p80 = por %p78, %p79
      %p81 = scmp.ne.s32.totalorder %s70, %s73
      %p82 = scmp.eq.s32.totalorder %s23, 7
      %p83 = por %p81, %p82
      %p84 = scmp.ne.s32.totalorder %s73, %s74
      %p85 = scmp.eq.s32.totalorder %s23, 0
      %p86 = por %p84, %p85
      %p87 = scmp.ne.s32.totalorder %s73, %s74
      %p88 = scmp.eq.s32.totalorder %s24, 7
      %p89 = por %p87, %p88
      %p91 = scmp.ne.s32.totalorder %s74, %s90
      %p92 = scmp.eq.s32.totalorder %s24, 0
      %p93 = por %p91, %p92
      %s94 = ssub.s32 %s25, %s37
      %s95 = ssub.s32 %s26, %s33
      %s96 = sor.u32 %s94, %s95
      %p97 = scmp.eq.s32.totalorder %s96, 0
      %s99 = sadd.s32 %s98, 1
      %s100 = scalar_select %p97, %s98, %s99
      %p103 = pneg %p97
      %p104 = scmp.eq.s32.totalorder %s18, 7
      %p105 = por %p103, %p104
      %p106 = scmp.ne.s32.totalorder %s98, %s101
      %p107 = scmp.eq.s32.totalorder %s18, 0
      %p108 = por %p106, %p107
      %p109 = scmp.ne.s32.totalorder %s98, %s101
      %p110 = scmp.eq.s32.totalorder %s23, 7
      %p111 = por %p109, %p110
      %p112 = scmp.ne.s32.totalorder %s101, %s102
      %p113 = scmp.eq.s32.totalorder %s23, 0
      %p114 = por %p112, %p113
      %p115 = scmp.ne.s32.totalorder %s101, %s102
      %p116 = scmp.eq.s32.totalorder %s24, 7
      %p117 = por %p115, %p116
      %p119 = scmp.ne.s32.totalorder %s102, %s118
      %p120 = scmp.eq.s32.totalorder %s24, 0
      %p121 = por %p119, %p120
      %s122 = ssub.s32 %s25, %s37
      %p123 = scmp.eq.s32.totalorder %s122, 0
      %s125 = sadd.s32 %s124, 1
      %s126 = scalar_select %p123, %s124, %s125
      %p129 = pneg %p123
      %p130 = scmp.eq.s32.totalorder %s18, 7
      %p131 = por %p129, %p130
      %p132 = scmp.ne.s32.totalorder %s124, %s127
      %p133 = scmp.eq.s32.totalorder %s18, 0
      %p134 = por %p132, %p133
      %p135 = scmp.ne.s32.totalorder %s124, %s127
      %p136 = scmp.eq.s32.totalorder %s23, 7
      %p137 = por %p135, %p136
      %p138 = scmp.ne.s32.totalorder %s127, %s128
      %p139 = scmp.eq.s32.totalorder %s23, 0
      %p140 = por %p138, %p139
      %p141 = scmp.ne.s32.totalorder %s127, %s128
      %p142 = scmp.eq.s32.totalorder %s24, 7
      %p143 = por %p141, %p142
      %p145 = scmp.ne.s32.totalorder %s128, %s144
      %p146 = scmp.eq.s32.totalorder %s24, 0
      %p147 = por %p145, %p146
      %p148 = scmp.le.s32.totalorder 1, %s18
      %p149 = scmp.lt.s32.totalorder %s18, 9
      %p150 = pnand %p148, %p149
      %p151 = pneg %p150
      // Predicated region
      $region9: #{tpu_custom_call.1} parent=5 // pred_check
        _
      $region10: #{tpu_custom_call.1} parent=5 // pred_check_branch
        %153 = sbr.rel (%p150) target = $region12
      $region11: #{tpu_custom_call.1} parent=5 // pred_region
        %s154 = ssub.s32 %s18, 1
      $region12: #{tpu_custom_call.1} parent=5 // pred_fallthru
        _
      %p155 = scmp.lt.s32.totalorder %s18, 8
      // Predicated region
      $region13: #{tpu_custom_call.1} parent=5 // pred_check
        %p156 = pneg %p155
      $region14: #{tpu_custom_call.1} parent=5 // pred_check_branch
        %158 = sbr.rel (%p156) target = $region16
      $region15: #{tpu_custom_call.1} parent=5 // pred_region
        // Predicated region
        $region17: #{tpu_custom_call.1} parent=15 // pred_check
          %p159 = pneg %p52
        $region18: #{tpu_custom_call.1} parent=15 // pred_check_branch
          %161 = sbr.rel (%p159) target = $region20
        $region19: #{tpu_custom_call.1} parent=15 // pred_region
          %s162 = sand.u32 %s42, 1
          %s163 = scalar_lea.sflag [#allocation3], %s162
          %s164 = sand.u32 %s42, 1
          %s165 = smul.addr %s164, 16
          %s166 = scalar_lea.vmem [#allocation2], %s165
          %s168 = ssub.s32 256, 256
          %169 = vsyncadd %s163, %s168
          %s170 = smul.addr %s25, 8
          %s171 = sadd.s32 %s26, %s170
          %s172 = smul.addr %s171, 128
          %s173 = scalar_lea.hbm %s0, %s172
          %s174 = sshll.u32 %s166, 4
          %s175 = int_to_ptr.vmem [resolvable:$true] %s174
          %180 = dma.hbm_to_vmem [thread:$0]  %s173, 256, %s175, %s163, 512, 128, 8
        $region20: #{tpu_custom_call.1} parent=15 // pred_fallthru
          _
        // Predicated region
        $region21: #{tpu_custom_call.1} parent=15 // pred_check
          %p181 = pneg %p80
        $region22: #{tpu_custom_call.1} parent=15 // pred_check_branch
          %183 = sbr.rel (%p181) target = $region24
        $region23: #{tpu_custom_call.1} parent=15 // pred_region
          %s184 = sand.u32 %s18, 1
          %s185 = scalar_lea.sflag [#allocation6], %s184
          %s186 = sand.u32 %s70, 1
          %s187 = smul.addr %s186, 8
          %s188 = scalar_lea.vmem [#allocation5], %s187
          %s190 = ssub.s32 128, 128
          %191 = vsyncadd %s185, %s190
          %s192 = smul.addr %s25, 8
          %s193 = sadd.s32 %s26, %s192
          %s194 = smul.addr %s193, 128
          %s195 = scalar_lea.hbm %s1, %s194
          %s197 = sshll.u32 %s188, 4
          %s198 = int_to_ptr.vmem [resolvable:$true] %s197
          %200 = dma.hbm_to_vmem [thread:$0]  %s195, 128, %s198, %s185
        $region24: #{tpu_custom_call.1} parent=15 // pred_fallthru
          _
        // Predicated region
        $region25: #{tpu_custom_call.1} parent=15 // pred_check
          %p201 = pneg %p108
        $region26: #{tpu_custom_call.1} parent=15 // pred_check_branch
          %203 = sbr.rel (%p201) target = $region28
        $region27: #{tpu_custom_call.1} parent=15 // pred_region
          %s204 = sand.u32 %s18, 1
          %s205 = scalar_lea.sflag [#allocation6], %s204
          %s206 = sand.u32 %s98, 1
          %s207 = smul.addr %s206, 16
          %s208 = scalar_lea.vmem [#allocation7], %s207
          %s210 = ssub.s32 256, 256
          %211 = vsyncadd %s205, %s210
          %s212 = smul.addr %s25, 8
          %s213 = sadd.s32 %s26, %s212
          %s214 = smul.addr %s213, 128
          %s215 = scalar_lea.hbm %s2, %s214
          %s216 = sshll.u32 %s208, 4
          %s217 = int_to_ptr.vmem [resolvable:$true] %s216
          %222 = dma.hbm_to_vmem [thread:$0]  %s215, 256, %s217, %s205, 512, 128, 8
        $region28: #{tpu_custom_call.1} parent=15 // pred_fallthru
          _
      $region16: #{tpu_custom_call.1} parent=5 // pred_fallthru
        _
      %p223 = scmp.le.s32.totalorder 1, %s18
      %p224 = scmp.lt.s32.totalorder %s18, 9
      %p225 = pnand %p223, %p224
      %p226 = pneg %p225
      // Predicated region
      $region29: #{tpu_custom_call.1} parent=5 // pred_check
        _
      $region30: #{tpu_custom_call.1} parent=5 // pred_check_branch
        %228 = sbr.rel (%p225) target = $region32
      $region31: #{tpu_custom_call.1} parent=5 // pred_region
        %s229 = ssub.s32 %s18, 1
        %s230 = sand.u32 %s45, 1
        %s231 = scalar_lea.sflag [#allocation3], %s230
        %s232 = sand.u32 %s45, 1
        %s233 = smul.addr %s232, 16
        %s234 = scalar_lea.vmem [#allocation2], %s233
        // Predicated region
        $region33: #{tpu_custom_call.1} parent=31 // pred_check
          %p235 = pneg %p58
        $region34: #{tpu_custom_call.1} parent=31 // pred_check_branch
          %237 = sbr.rel (%p235) target = $region36
        $region35: #{tpu_custom_call.1} parent=31 // pred_region
          %238 = dma.done %s231, 256
        $region36: #{tpu_custom_call.1} parent=31 // pred_fallthru
          _
        %s239 = sand.u32 %s23, 1
        %s240 = scalar_lea.sflag [#allocation6], %s239
        %s241 = sand.u32 %s73, 1
        %s242 = smul.addr %s241, 8
        %s243 = scalar_lea.vmem [#allocation5], %s242
        // Predicated region
        $region37: #{tpu_custom_call.1} parent=31 // pred_check
          %p244 = pneg %p86
        $region38: #{tpu_custom_call.1} parent=31 // pred_check_branch
          %246 = sbr.rel (%p244) target = $region40
        $region39: #{tpu_custom_call.1} parent=31 // pred_region
          %247 = dma.done %s240, 128
        $region40: #{tpu_custom_call.1} parent=31 // pred_fallthru
          _
        %s248 = sand.u32 %s23, 1
        %s249 = scalar_lea.sflag [#allocation6], %s248
        %s250 = sand.u32 %s101, 1
        %s251 = smul.addr %s250, 16
        %s252 = scalar_lea.vmem [#allocation7], %s251
        // Predicated region
        $region41: #{tpu_custom_call.1} parent=31 // pred_check
          %p253 = pneg %p114
        $region42: #{tpu_custom_call.1} parent=31 // pred_check_branch
          %255 = sbr.rel (%p253) target = $region44
        $region43: #{tpu_custom_call.1} parent=31 // pred_region
          %256 = dma.done %s249, 256
        $region44: #{tpu_custom_call.1} parent=31 // pred_fallthru
          _
        %s257 = sand.u32 %s45, 1
        %s258 = scalar_lea.sflag [#allocation3], %s257
        %s259 = sand.u32 %s45, 1
        %s260 = smul.addr %s259, 16
        %s261 = scalar_lea.vmem [#allocation2], %s260
        %p262 = pneg %p58
        %p263 = pneg %p55
        %s264 = sand.u32 %s23, 1
        %s265 = scalar_lea.sflag [#allocation6], %s264
        %s266 = sand.u32 %s73, 1
        %s267 = smul.addr %s266, 8
        %s268 = scalar_lea.vmem [#allocation5], %s267
        %p269 = pneg %p86
        %p270 = pneg %p83
        %s271 = sand.u32 %s23, 1
        %s272 = scalar_lea.sflag [#allocation6], %s271
        %s273 = sand.u32 %s101, 1
        %s274 = smul.addr %s273, 16
        %s275 = scalar_lea.vmem [#allocation7], %s274
        %p276 = pneg %p114
        %p277 = pneg %p111
        %p278 = pneg %p140
        %p279 = pneg %p137
        %s280 = sand.u32 %s127, 1
        %s281 = scalar_lea.sflag [#allocation4], %s280
        %s282 = sand.u32 %s127, 1
        %s283 = smul.addr %s282, 8
        %s284 = scalar_lea.vmem [#allocation8], %s283
        %p285 = scmp.eq.s32.totalorder %s28, 0
        // Predicated region
        $region45: #{tpu_custom_call.1} parent=31 // pred_check
          %p286 = pneg %p285
        $region46: #{tpu_custom_call.1} parent=31 // pred_check_branch
          %288 = sbr.rel (%p286) target = $region48
        $region47: #{tpu_custom_call.1} parent=31 // pred_region
          %289 = vst [vmem:[%s284] sm:$0xff] 0.0
        $region48: #{tpu_custom_call.1} parent=31 // pred_fallthru
          _
        %v290 = vld [vmem:[%s234] sm:$0xff]
        %v291 = vld [vmem:[%s234 + $0x8] sm:$0xff]
        %v292 = vld [vmem:[%s252] sm:$0xff]
        %v293 = vld [vmem:[%s252 + $0x8] sm:$0xff]
        %v294 = vmul.f32 %v292, 0.999
        %v295 = vmul.f32 %v293, 0.999
        %v296 = vadd.f32 %v294, 0.0005
        %v297 = vadd.f32 %v295, 0.0005
        %v298 = vld [vmem:[%s243] sm:$0xff]
        %v299 = vmul.f32 %v290, -0.5
        %v300 = vmul.f32 %v291, -0.5
        %v301 = vmax.f32 %v299, 0.0
        %v302 = vmax.f32 %v300, 0.0
        %v303 = vand.u32 2147483647, %v299
        %v304 = vand.u32 2147483647, %v300
        %v305 = vsub.f32 0.0, %v303
        %v306 = vsub.f32 0.0, %v304
        %v307 = vmul.f32 %v305, 1.442695
        %v308 = vpow.pop %v307
        %v309 = vmul.f32 %v306, 1.442695
        %v310 = vpow.pop %v309
        %v311 = vadd.f32 %v308, 1.0
        %v312 = vlog2.pop %v311
        %v313 = vmul.f32 %v312, 0.6931472
        %v314 = vmul.f32 -0.5, %v308
        %v315 = vadd.f32 %v314, 1.0
        %v316 = vmul.f32 %v315, %v308
        %v317 = vand.u32 2147483647, %v308
        %vm318 = vcmp.lt.f32.partialorder %v317, 0.0004427343
        %v319 = vsel %vm318, %v316, %v313
        %v320 = vadd.f32 %v310, 1.0
        %v321 = vlog2.pop %v320
        %v322 = vmul.f32 %v321, 0.6931472
        %v323 = vmul.f32 -0.5, %v310
        %v324 = vadd.f32 %v323, 1.0
        %v325 = vmul.f32 %v324, %v310
        %v326 = vand.u32 2147483647, %v310
        %vm327 = vcmp.lt.f32.partialorder %v326, 0.0004427343
        %v328 = vsel %vm327, %v325, %v322
        %v329 = vadd.f32 %v301, %v319
        %v330 = vadd.f32 %v302, %v328
        %v331 = vsub.f32 0.0, %v329
        %v332 = vsub.f32 0.0, %v330
        %v333 = vsub.f32 %v299, %v329
        %v334 = vsub.f32 %v300, %v330
        %v335 = vmul.f32 %v296, %v331
        %v336 = vmul.f32 %v297, %v332
        %v337 = vsub.f32 1.0, %v296
        %v338 = vsub.f32 1.0, %v297
        %v339 = vmul.f32 %v337, %v333
        %v340 = vmul.f32 %v338, %v334
        %v341 = vadd.f32 %v335, %v339
        %v342 = vadd.f32 %v336, %v340
        %v343 = vadd.f32 %v341, %v342
        %v344 = vmul.f32 %v298, %v331
        %v345 = vadd.f32 %v343, %v344
        %v346 = vsub.f32 0.0, %v345
        %v347 = vld [vmem:[%s284] sm:$0xff]
        %v348 = vadd.f32 %v347, %v346
        %349 = vst [vmem:[%s284] sm:$0xff] %v348
        %s350 = sand.u32 %s127, 1
        %s351 = scalar_lea.sflag [#allocation4], %s350
        %s352 = sand.u32 %s127, 1
        %s353 = smul.addr %s352, 8
        %s354 = scalar_lea.vmem [#allocation8], %s353
        // Predicated region
        $region49: #{tpu_custom_call.1} parent=31 // pred_check
          %p355 = pneg %p137
        $region50: #{tpu_custom_call.1} parent=31 // pred_check_branch
          %357 = sbr.rel (%p355) target = $region52
        $region51: #{tpu_custom_call.1} parent=31 // pred_region
          %s359 = ssub.s32 128, 128
          %360 = vsyncadd %s351, %s359
          %s361 = smul.addr %s27, 128
          %s362 = scalar_lea.hbm %s3, %s361
          %s364 = sshll.u32 %s354, 4
          %s365 = int_to_ptr.vmem [resolvable:$true] %s364
          %367 = dma.vmem_to_hbm [thread:$0]  %s365, 128, %s362, %s351
        $region52: #{tpu_custom_call.1} parent=31 // pred_fallthru
          _
      $region32: #{tpu_custom_call.1} parent=5 // pred_fallthru
        _
      %p368 = scmp.le.s32.totalorder 2, %s18
      // Predicated region
      $region53: #{tpu_custom_call.1} parent=5 // pred_check
        %p369 = pneg %p368
      $region54: #{tpu_custom_call.1} parent=5 // pred_check_branch
        %371 = sbr.rel (%p369) target = $region56
      $region55: #{tpu_custom_call.1} parent=5 // pred_region
        %s372 = ssub.s32 %s18, 2
        // Predicated region
        $region57: #{tpu_custom_call.1} parent=55 // pred_check
          %p373 = pneg %p143
        $region58: #{tpu_custom_call.1} parent=55 // pred_check_branch
          %375 = sbr.rel (%p373) target = $region60
        $region59: #{tpu_custom_call.1} parent=55 // pred_region
          %s376 = sand.u32 %s128, 1
          %s377 = scalar_lea.sflag [#allocation4], %s376
          %s378 = sand.u32 %s128, 1
          %s379 = smul.addr %s378, 8
          %s380 = scalar_lea.vmem [#allocation8], %s379
          %381 = dma.done %s377, 128
        $region60: #{tpu_custom_call.1} parent=55 // pred_fallthru
          _
      $region56: #{tpu_custom_call.1} parent=5 // pred_fallthru
        _
    $region6: #{tpu_custom_call.1} parent=1 // loop_footer
      %s22 = sadd.s32 1, %s18
    $region7: #{tpu_custom_call.1} parent=1 // loop_footer_branch
      %17 = sbr.rel target = $region3
    $region8: #{tpu_custom_call.1} parent=1 // loop_exit
      _
    %382 = vsyncpa [#allocation3], 1
    %s383 = scalar_lea.sflag [#allocation3], 1
    %384 = vsyncpa %s383, 1
    %385 = vsyncpa [#allocation6], 1
    %s386 = scalar_lea.sflag [#allocation6], 1
    %387 = vsyncpa %s386, 1
    %388 = vsyncpa [#allocation4], 1
    %s389 = scalar_lea.sflag [#allocation4], 1
    %390 = vsyncpa %s389, 1

</llo_original>
